<compile_context>
chip_gen: v7x
topology: tpu7x:2x2x1
jax: 0.10.0
libtpu: 0.0.40
codegen_flags: <defaults>
</compile_context>

<pallas_src>
import functools
from itertools import permutations

import numpy as np
import jax
import jax.numpy as jnp
from jax.experimental import pallas as pl
from jax.experimental.pallas import tpu as pltpu

_LANE = 128
_SUBLANE = 8
_MAX_TILE_BYTES = 8 << 20          # per output tile (Pallas double-buffers it)


def _round_up(x, m):
    return ((x + m - 1) // m) * m


def _largest_divisor_tile(extent, unit, target):
    """Largest multiple of `unit` that divides `extent` and is <= max(target, unit)."""
    m = extent // unit
    cap = max(1, min(m, target // unit))
    for d in range(cap, 0, -1):
        if m % d == 0:
            return d * unit
    return unit


def _pick_vmem_limit(tile_bytes):
    """Double-buffered output tile + packed inputs + Mosaic scratch headroom,
    capped at ~75% of physical VMEM (v5e/v6e: 128 MiB, v7x: 64 MiB)."""
    needed = 2 * tile_bytes + (8 << 20)
    try:
        phys = int(pltpu.get_tpu_info().vmem_capacity_bytes)
    except Exception:
        phys = 64 << 20            # conservative fallback (v7x-sized)
    cap = max(32 << 20, (phys * 3) // 4)
    return int(min(max(needed, 32 << 20), cap))


def _cost_kernel(tgt_ref, pred_ref, cost_ref):
    # tgt_ref:  (TILE_T, 8)  cols [w_b*x, w_b*y, w_b*w, w_b*h, w_b*angle, label, 0, 0]
    # pred_ref: (8, TILE_N)  rows [w_b*x; w_b*y; w_b*w; w_b*h; w_b*angle;
    #                              -w_l*sigmoid(logit); 0; 0]
    # cost_ref: (TILE_T, TILE_N)
    # Weights are pre-folded in the wrapper, so the body is sub/abs/add + 1 mul.
    tgt = tgt_ref[...]
    pred = pred_ref[...]
    acc = jnp.abs(tgt[:, 0:1] - pred[0:1, :])
    for k in range(1, 5):                       # unrolled at trace time
        acc = acc + jnp.abs(tgt[:, k:k + 1] - pred[k:k + 1, :])
    # TODO(synk): the class outer-product could be pushed to the idle MXU via a
    # K=1 jnp.dot; kept on the VPU here (secondary win, lowering not guaranteed).
    cost_ref[...] = acc + tgt[:, 5:6] * pred[5:6, :]


@functools.partial(jax.jit, static_argnames=("tile_t", "tile_n", "vmem_limit"))
def _cost_matrix_pallas(tgt_packed, pred_packed, *, tile_t, tile_n, vmem_limit):
    t_pad = tgt_packed.shape[0]
    n_pad = pred_packed.shape[1]
    grid = (n_pad // tile_n, t_pad // tile_t)   # N outer (more blocks), T inner
    return pl.pallas_call(
        _cost_kernel,
        out_shape=jax.ShapeDtypeStruct((t_pad, n_pad), jnp.float32),
        grid=grid,
        in_specs=[
            # targets: blocked along T (sublanes); lane dim 8 == full array dim
            pl.BlockSpec((tile_t, 8), lambda i, j: (j, 0)),
            # predictions: blocked along N (lanes); sublane dim 8 == full array dim
            pl.BlockSpec((8, tile_n), lambda i, j: (0, i)),
        ],
        out_specs=pl.BlockSpec((tile_t, tile_n), lambda i, j: (j, i)),
        compiler_params=pltpu.CompilerParams(
            dimension_semantics=("parallel", "parallel"),
            vmem_limit_bytes=vmem_limit,
        ),
    )(tgt_packed, pred_packed)


def _linear_sum_assignment_small(cost):
    """Exact assignment by brute force (tiny demo sizes only).

    # TODO(synk): production code would call scipy.optimize.linear_sum_assignment
    # on the host; there is no Pallas/TPU equivalent of the Hungarian algorithm.
    """
    cost = np.asarray(cost, dtype=np.float64)
    n_rows, n_cols = cost.shape
    assert n_rows >= n_cols, "demo assumes num_queries >= num_target_boxes"
    best_rows, best_cost = (), np.inf
    col_idx = np.arange(n_cols)
    for perm in permutations(range(n_rows), n_cols):
        s = cost[list(perm), col_idx].sum()
        if s < best_cost:
            best_cost, best_rows = s, perm
    rows = np.asarray(best_rows, dtype=np.int64)
    cols = np.arange(n_cols, dtype=np.int64)
    order = np.argsort(rows)
    return rows[order], cols[order]


def hungarian_matcher_forward(outputs, targets, *, weight_boxes, weight_logits,
                              angle_minmax=None):
    """JAX/Pallas port of HungarianMatcher.forward: cost matrix on TPU,
    assignment on host."""
    boxes = outputs["boxes"]     # (B, Q, 4)
    angle = outputs["angle"]     # (B, Q, 1), raw in (0, 1)
    logits = outputs["logits"]   # (B, Q, 1)
    B, Q = boxes.shape[:2]
    N = B * Q
    w_b = float(weight_boxes)    # assumed >= 0 (folded into |.| pre-scaling)
    w_l = float(weight_logits)

    sizes = [int(b.shape[0]) for b in targets["boxes"]]
    T = int(sum(sizes))

    if N == 0 or T == 0:
        cost_matrix = np.zeros((B, Q, T), dtype=np.float32)
        splits = [np.zeros((B, Q, s), dtype=np.float32) for s in sizes]
        indices = [(np.zeros((0,), np.int64), np.zeros((0,), np.int64)) for _ in sizes]
        return indices, splits, cost_matrix

    out_boxes = boxes.reshape(N, 4).astype(jnp.float32)
    out_angle = angle.reshape(N).astype(jnp.float32)
    out_logits = logits.reshape(N).astype(jnp.float32)
    if angle_minmax is not None:
        a_min, a_max = float(angle_minmax[0]), float(angle_minmax[1])
        out_angle = a_min + out_angle * (a_max - a_min)

    tgt_boxes = jnp.concatenate([b.reshape(-1, 4) for b in targets["boxes"]],
                                axis=0).astype(jnp.float32)
    tgt_angle = jnp.concatenate([a.reshape(-1) for a in targets["angle"]],
                                axis=0).astype(jnp.float32)
    if "label" in targets:
        tgt_labels = jnp.concatenate([l.reshape(-1) for l in targets["label"]],
                                     axis=0).astype(jnp.float32)
    else:
        tgt_labels = jnp.ones((T,), dtype=jnp.float32)

    # --- padding: N (lanes) to 128, T (sublanes) to 8; tiles divide exactly.
    n_pad = _round_up(N, _LANE)
    t_pad = _round_up(T, _SUBLANE)

    lane_target = 2048
    if n_pad >= 2 * _LANE:
        # keep >= 2 blocks along the (likely only multi-block) parallel axis so
        # v7x's two TensorCores both get work; harmless on v5e/v6e.
        lane_target = min(lane_target, n_pad // 2)
    tile_n = _largest_divisor_tile(n_pad, _LANE, lane_target)
    sub_target = max(_SUBLANE, _MAX_TILE_BYTES // (tile_n * 4))
    tile_t = _largest_divisor_tile(t_pad, _SUBLANE, sub_target)

    # --- pack operands + fold weights (all on tiny (.,8)/(8,.) arrays).
    pred_packed = jnp.zeros((8, n_pad), dtype=jnp.float32)
    pred_packed = pred_packed.at[0:4, :N].set((w_b * out_boxes).T)
    pred_packed = pred_packed.at[4, :N].set(w_b * out_angle)
    pred_packed = pred_packed.at[5, :N].set(-w_l * jax.nn.sigmoid(out_logits))

    tgt_packed = jnp.zeros((t_pad, 8), dtype=jnp.float32)
    tgt_packed = tgt_packed.at[:T, 0:4].set(w_b * tgt_boxes)
    tgt_packed = tgt_packed.at[:T, 4].set(w_b * tgt_angle)
    tgt_packed = tgt_packed.at[:T, 5].set(tgt_labels)

    vmem_limit = _pick_vmem_limit(tile_t * tile_n * 4)
    cost_t_pad = _cost_matrix_pallas(tgt_packed, pred_packed,
                                     tile_t=int(tile_t), tile_n=int(tile_n),
                                     vmem_limit=int(vmem_limit))

    # Single device->host copy of the padded result; slice / transpose / reshape
    # in NumPy (padded rows/cols never reach the solver).
    cost_np = np.asarray(jax.device_get(cost_t_pad))[:T, :N]            # (T, N)
    cost_matrix = np.ascontiguousarray(cost_np.T).reshape(B, Q, T)      # (B, Q, T)

    splits = np.split(cost_matrix, np.cumsum(sizes)[:-1], axis=-1)
    indices = [_linear_sum_assignment_small(c[i]) for i, c in enumerate(splits)]
    indices = [(np.asarray(i, dtype=np.int64), np.asarray(j, dtype=np.int64))
               for i, j in indices]
    return indices, splits, cost_matrix


if __name__ == "__main__":
    key = jax.random.PRNGKey(0)
    B, Q = 2, 8
    sizes = [3, 5]                       # num_target_boxes per batch element

    k = jax.random.split(key, 8)
    outputs = {
        "boxes":  jax.random.uniform(k[0], (B, Q, 4), dtype=jnp.float32),
        "angle":  jax.random.uniform(k[1], (B, Q, 1), dtype=jnp.float32),   # raw (0,1)
        "logits": jax.random.normal(k[2], (B, Q, 1), dtype=jnp.float32),
    }
    targets = {
        "boxes": [jax.random.uniform(k[3], (sizes[0], 4), dtype=jnp.float32),
                  jax.random.uniform(k[4], (sizes[1], 4), dtype=jnp.float32)],
        "angle": [jax.random.uniform(k[5], (sizes[0], 1), dtype=jnp.float32,
                                     minval=-0.785398, maxval=0.785398),
                  jax.random.uniform(k[6], (sizes[1], 1), dtype=jnp.float32,
                                     minval=-0.785398, maxval=0.785398)],
    }

    indices, cost_splits, cost_matrix = hungarian_matcher_forward(
        outputs, targets,
        weight_boxes=5.0, weight_logits=2.0,
        angle_minmax=(-0.785398, 0.785398))

    jax.block_until_ready(cost_matrix)

    # sanity check against a pure-JAX reference of the DETR cost
    prob = jax.nn.sigmoid(outputs["logits"].reshape(-1, 1))
    ang = -0.785398 + outputs["angle"].reshape(-1, 1) * (2 * 0.785398)
    ob5 = jnp.concatenate([outputs["boxes"].reshape(-1, 4), ang], axis=1)
    tb5 = jnp.concatenate([jnp.concatenate(targets["boxes"], 0),
                           jnp.concatenate(targets["angle"], 0)], axis=1)
    T = tb5.shape[0]
    ref = (2.0 * (-(prob * jnp.ones((1, T))))
           + 5.0 * jnp.abs(ob5[:, None, :] - tb5[None, :, :]).sum(-1)).reshape(B, Q, -1)
    np.testing.assert_allclose(np.asarray(cost_matrix), np.asarray(ref),
                               rtol=1e-5, atol=1e-4)
    assert all(len(i) == len(j) == s for (i, j), s in zip(indices, sizes))

    print("KERNEL_OK")
</pallas_src>

<mosaic_0001>
module attributes {stable_mosaic.version = 11 : i64} {
  func.func @_cost_kernel(%arg0: i32, %arg1: i32, %arg2: memref<8x8xf32, #tpu.memory_space<vmem>>, %arg3: memref<8x128xf32, #tpu.memory_space<vmem>>, %arg4: memref<8x128xf32, #tpu.memory_space<vmem>>) attributes {dimension_semantics = [#tpu.dimension_semantics<parallel>, #tpu.dimension_semantics<parallel>], iteration_bounds = array<i64: 1, 1>, scalar_prefetch = 0 : i64, scratch_operands = 0 : i64, tpu.core_type = #tpu.core_type<tc>, window_params = [{transform_indices = @transform_0, window_bounds = array<i64: 8, 8>}, {transform_indices = @transform_1, window_bounds = array<i64: 8, 128>}, {transform_indices = @transform_2, window_bounds = array<i64: 8, 128>}]} {
    %c0 = arith.constant 0 : index
    %c0_0 = arith.constant 0 : index
    %0 = vector.load %arg2[%c0, %c0_0] : memref<8x8xf32, #tpu.memory_space<vmem>>, vector<8x8xf32>
    %c0_1 = arith.constant 0 : index
    %c0_2 = arith.constant 0 : index
    %1 = vector.load %arg3[%c0_1, %c0_2] : memref<8x128xf32, #tpu.memory_space<vmem>>, vector<8x128xf32>
    %2 = vector.extract_strided_slice %0 {offsets = [0, 0], sizes = [8, 1], strides = [1, 1]} : vector<8x8xf32> to vector<8x1xf32>
    %3 = vector.extract_strided_slice %1 {offsets = [0, 0], sizes = [1, 128], strides = [1, 1]} : vector<8x128xf32> to vector<1x128xf32>
    %4 = vector.broadcast %2 : vector<8x1xf32> to vector<8x128xf32>
    %5 = vector.broadcast %3 : vector<1x128xf32> to vector<8x128xf32>
    %6 = arith.subf %4, %5 : vector<8x128xf32>
    %7 = math.absf %6 : vector<8x128xf32>
    %8 = vector.extract_strided_slice %0 {offsets = [0, 1], sizes = [8, 1], strides = [1, 1]} : vector<8x8xf32> to vector<8x1xf32>
    %9 = vector.extract_strided_slice %1 {offsets = [1, 0], sizes = [1, 128], strides = [1, 1]} : vector<8x128xf32> to vector<1x128xf32>
    %10 = vector.broadcast %8 : vector<8x1xf32> to vector<8x128xf32>
    %11 = vector.broadcast %9 : vector<1x128xf32> to vector<8x128xf32>
    %12 = arith.subf %10, %11 : vector<8x128xf32>
    %13 = math.absf %12 : vector<8x128xf32>
    %14 = arith.addf %7, %13 : vector<8x128xf32>
    %15 = vector.extract_strided_slice %0 {offsets = [0, 2], sizes = [8, 1], strides = [1, 1]} : vector<8x8xf32> to vector<8x1xf32>
    %16 = vector.extract_strided_slice %1 {offsets = [2, 0], sizes = [1, 128], strides = [1, 1]} : vector<8x128xf32> to vector<1x128xf32>
    %17 = vector.broadcast %15 : vector<8x1xf32> to vector<8x128xf32>
    %18 = vector.broadcast %16 : vector<1x128xf32> to vector<8x128xf32>
    %19 = arith.subf %17, %18 : vector<8x128xf32>
    %20 = math.absf %19 : vector<8x128xf32>
    %21 = arith.addf %14, %20 : vector<8x128xf32>
    %22 = vector.extract_strided_slice %0 {offsets = [0, 3], sizes = [8, 1], strides = [1, 1]} : vector<8x8xf32> to vector<8x1xf32>
    %23 = vector.extract_strided_slice %1 {offsets = [3, 0], sizes = [1, 128], strides = [1, 1]} : vector<8x128xf32> to vector<1x128xf32>
    %24 = vector.broadcast %22 : vector<8x1xf32> to vector<8x128xf32>
    %25 = vector.broadcast %23 : vector<1x128xf32> to vector<8x128xf32>
    %26 = arith.subf %24, %25 : vector<8x128xf32>
    %27 = math.absf %26 : vector<8x128xf32>
    %28 = arith.addf %21, %27 : vector<8x128xf32>
    %29 = vector.extract_strided_slice %0 {offsets = [0, 4], sizes = [8, 1], strides = [1, 1]} : vector<8x8xf32> to vector<8x1xf32>
    %30 = vector.extract_strided_slice %1 {offsets = [4, 0], sizes = [1, 128], strides = [1, 1]} : vector<8x128xf32> to vector<1x128xf32>
    %31 = vector.broadcast %29 : vector<8x1xf32> to vector<8x128xf32>
    %32 = vector.broadcast %30 : vector<1x128xf32> to vector<8x128xf32>
    %33 = arith.subf %31, %32 : vector<8x128xf32>
    %34 = math.absf %33 : vector<8x128xf32>
    %35 = arith.addf %28, %34 : vector<8x128xf32>
    %36 = vector.extract_strided_slice %0 {offsets = [0, 5], sizes = [8, 1], strides = [1, 1]} : vector<8x8xf32> to vector<8x1xf32>
    %37 = vector.extract_strided_slice %1 {offsets = [5, 0], sizes = [1, 128], strides = [1, 1]} : vector<8x128xf32> to vector<1x128xf32>
    %38 = vector.broadcast %36 : vector<8x1xf32> to vector<8x128xf32>
    %39 = vector.broadcast %37 : vector<1x128xf32> to vector<8x128xf32>
    %40 = arith.mulf %38, %39 : vector<8x128xf32>
    %41 = arith.addf %35, %40 : vector<8x128xf32>
    %c0_3 = arith.constant 0 : index
    %c0_4 = arith.constant 0 : index
    %42 = vector.load %arg4[%c0_3, %c0_4] : memref<8x128xf32, #tpu.memory_space<vmem>>, vector<8x128xf32>
    tpu.vector_store %arg4[%c0_3, %c0_4], %41 {strides = array<i32>} : memref<8x128xf32, #tpu.memory_space<vmem>>, vector<8x128xf32>,
    return
  }
  func.func @transform_0(%arg0: i32, %arg1: i32) -> (i32, i32) {
    %c0_i32 = arith.constant 0 : i32
    %c0_i32_0 = arith.constant 0 : i32
    return %arg1, %c0_i32 : i32, i32
  }
  func.func @transform_1(%arg0: i32, %arg1: i32) -> (i32, i32) {
    %c0_i32 = arith.constant 0 : i32
    %c0_i32_0 = arith.constant 0 : i32
    return %c0_i32, %arg0 : i32, i32
  }
  func.func @transform_2(%arg0: i32, %arg1: i32) -> (i32, i32) {
    %c0_i32 = arith.constant 0 : i32
    return %arg1, %arg0 : i32, i32
  }
}

</mosaic_0001>

<llo_original>
// kernel: _cost_matrix_pallas.1
$region0: #{_cost_matrix_pallas.1}
  #allocation0 [shape = 'u32[]', space=smem, size = 0x4, offset = 0x4, fixed_abs, tag = 'smem constant byte address 0x4 - core index']
  #allocation1 [shape = 'u32[144,128]{1,0:T(1,128)}', space=vmem, size = 0x12000, scoped, tag = 'internal scratch']
  %s0 = inlined_call_operand.hbm [shape: f32[8,8], index: 0, kind: input, shape index: {}]
  %s1 = inlined_call_operand.hbm [shape: f32[8,128], index: 1, kind: input, shape index: {}]
  %s2 = inlined_call_operand.hbm [shape: f32[8,128], index: 2, kind: output, shape index: {}]
  %s3 = sld [smem:[#allocation0]]
  $region26: #{_cost_matrix_pallas.1} parent=0
    _
  %s5 = ssub.s32 1, %s3
  %s6 = scalar_select 0, %s5, %s3
  $region1: #{_cost_matrix_pallas.1} parent=0
    #allocation2 [shape = 'u8[4096]{0}', space=vmem, size = 0x1000, scoped, tag = 'input window, operand 0, single buffered']
    #allocation3 [shape = 's32[1]{0}', space=sflag, size = 0x4, scoped, tag = 'scoped memory for _cost_matrix_pallas.1']
    #allocation4 [shape = 's32[1]{0}', space=sflag, size = 0x4, scoped, tag = 'scoped memory for _cost_matrix_pallas.1']
    #allocation5 [shape = 'u8[4096]{0}', space=vmem, size = 0x1000, scoped, tag = 'input window, operand 1, single buffered']
    #allocation6 [shape = 's32[1]{0}', space=sflag, size = 0x4, scoped, tag = 'scoped memory for _cost_matrix_pallas.1']
    #allocation7 [shape = 'u8[4096]{0}', space=vmem, size = 0x1000, scoped, tag = 'output window, operand 0, single buffered']
    %7 = vsyncpa [#allocation3], 0
    %8 = vsyncpa [#allocation6], 0
    %9 = vsyncpa [#allocation4], 0
    // Predicated region
    $region2: #{_cost_matrix_pallas.1} parent=1 // pred_check
      _
    $region3: #{_cost_matrix_pallas.1} parent=1 // pred_check_branch
      %11 = sbr.rel (0) target = $region5
    $region4: #{_cost_matrix_pallas.1} parent=1 // pred_region
      %s13 = ssub.s32 128, 128
      %14 = vsyncadd [#allocation3], %s13
      %s16 = sshll.u32 [#allocation2], 4
      %s17 = int_to_ptr.vmem [resolvable:$true] %s16
      %19 = dma.hbm_to_vmem [thread:$0]  %s0, 128, %s17, [#allocation3]
    $region5: #{_cost_matrix_pallas.1} parent=1 // pred_fallthru
      _
    // Predicated region
    $region6: #{_cost_matrix_pallas.1} parent=1 // pred_check
      _
    $region7: #{_cost_matrix_pallas.1} parent=1 // pred_check_branch
      %21 = sbr.rel (0) target = $region9
    $region8: #{_cost_matrix_pallas.1} parent=1 // pred_region
      %s23 = ssub.s32 128, 128
      %24 = vsyncadd [#allocation6], %s23
      %s26 = sshll.u32 [#allocation5], 4
      %s27 = int_to_ptr.vmem [resolvable:$true] %s26
      %29 = dma.hbm_to_vmem [thread:$0]  %s1, 128, %s27, [#allocation6]
    $region9: #{_cost_matrix_pallas.1} parent=1 // pred_fallthru
      _
    // Predicated region
    $region10: #{_cost_matrix_pallas.1} parent=1 // pred_check
      _
    $region11: #{_cost_matrix_pallas.1} parent=1 // pred_check_branch
      %31 = sbr.rel (0) target = $region13
    $region12: #{_cost_matrix_pallas.1} parent=1 // pred_region
      %32 = dma.done [#allocation3], 128
    $region13: #{_cost_matrix_pallas.1} parent=1 // pred_fallthru
      _
    // Predicated region
    $region14: #{_cost_matrix_pallas.1} parent=1 // pred_check
      _
    $region15: #{_cost_matrix_pallas.1} parent=1 // pred_check_branch
      %34 = sbr.rel (0) target = $region17
    $region16: #{_cost_matrix_pallas.1} parent=1 // pred_region
      %35 = dma.done [#allocation6], 128
    $region17: #{_cost_matrix_pallas.1} parent=1 // pred_fallthru
      _
    %v36 = vld [vmem:[#allocation2] sm:$0xff]
    %v37 = vld [vmem:[#allocation5] sm:$0xff]
    %39 = vset.pattern.permute.xlu0 0
    %40 = vperm.xlu0 %39, %v36
    %v41 = vpop.permute.xlu0 %40
    %v43 = vlaneseq
    %v44 = vshrl.u32 %v43, 7
    %v45 = vsub.s32 0, %v44
    %v46 = vrot.slane %v37, %v45
    %v47 = vsub.f32 %v41, %v46
    %v48 = vand.u32 2147483647, %v47
    %49 = vset.pattern.permute.xlu0 1
    %50 = vperm.xlu0 %49, %v36
    %v51 = vpop.permute.xlu0 %50
    %v53 = vlaneseq
    %v54 = vshrl.u32 %v53, 7
    %v55 = vsub.s32 1, %v54
    %v56 = vrot.slane %v37, %v55
    %v57 = vsub.f32 %v51, %v56
    %v58 = vand.u32 2147483647, %v57
    %v59 = vadd.f32 %v48, %v58
    %60 = vset.pattern.permute.xlu0 2
    %61 = vperm.xlu0 %60, %v36
    %v62 = vpop.permute.xlu0 %61
    %v64 = vlaneseq
    %v65 = vshrl.u32 %v64, 7
    %v66 = vsub.s32 2, %v65
    %v67 = vrot.slane %v37, %v66
    %v68 = vsub.f32 %v62, %v67
    %v69 = vand.u32 2147483647, %v68
    %v70 = vadd.f32 %v59, %v69
    %71 = vset.pattern.permute.xlu0 3
    %72 = vperm.xlu0 %71, %v36
    %v73 = vpop.permute.xlu0 %72
    %v75 = vlaneseq
    %v76 = vshrl.u32 %v75, 7
    %v77 = vsub.s32 3, %v76
    %v78 = vrot.slane %v37, %v77
    %v79 = vsub.f32 %v73, %v78
    %v80 = vand.u32 2147483647, %v79
    %v81 = vadd.f32 %v70, %v80
    %82 = vset.pattern.permute.xlu0 4
    %83 = vperm.xlu0 %82, %v36
    %v84 = vpop.permute.xlu0 %83
    %v86 = vlaneseq
    %v87 = vshrl.u32 %v86, 7
    %v88 = vsub.s32 4, %v87
    %v89 = vrot.slane %v37, %v88
    %v90 = vsub.f32 %v84, %v89
    %v91 = vand.u32 2147483647, %v90
    %v92 = vadd.f32 %v81, %v91
    %93 = vset.pattern.permute.xlu0 5
    %94 = vperm.xlu0 %93, %v36
    %v95 = vpop.permute.xlu0 %94
    %v97 = vlaneseq
    %v98 = vshrl.u32 %v97, 7
    %v99 = vsub.s32 5, %v98
    %v100 = vrot.slane %v37, %v99
    %v101 = vmul.f32 %v95, %v100
    %v102 = vadd.f32 %v92, %v101
    %103 = vst [vmem:[#allocation7] sm:$0xff] %v102
    // Predicated region
    $region18: #{_cost_matrix_pallas.1} parent=1 // pred_check
      _
    $region19: #{_cost_matrix_pallas.1} parent=1 // pred_check_branch
      %105 = sbr.rel (0) target = $region21
    $region20: #{_cost_matrix_pallas.1} parent=1 // pred_region
      %s107 = ssub.s32 128, 128
      %108 = vsyncadd [#allocation4], %s107
      %s110 = sshll.u32 [#allocation7], 4
      %s111 = int_to_ptr.vmem [resolvable:$true] %s110
      %113 = dma.vmem_to_hbm [thread:$0]  %s111, 128, %s2, [#allocation4]
    $region21: #{_cost_matrix_pallas.1} parent=1 // pred_fallthru
      _
    // Predicated region
    $region22: #{_cost_matrix_pallas.1} parent=1 // pred_check
      _
    $region23: #{_cost_matrix_pallas.1} parent=1 // pred_check_branch
      %115 = sbr.rel (0) target = $region25
    $region24: #{_cost_matrix_pallas.1} parent=1 // pred_region
      %116 = dma.done [#allocation4], 128
    $region25: #{_cost_matrix_pallas.1} parent=1 // pred_fallthru
      _
    %117 = vsyncpa [#allocation3], 1
    %118 = vsyncpa [#allocation6], 1
    %119 = vsyncpa [#allocation4], 1

</llo_original>
